<compile_context>
chip_gen: v7x
topology: tpu7x:2x2x1
jax: 0.10.0
libtpu: 0.0.40
codegen_flags: <defaults>
</compile_context>

<pallas_src>
import jax
import jax.numpy as jnp
import numpy as np
from jax import lax
from jax.experimental import pallas as pl
from jax.experimental.pallas import tpu as pltpu


# ----------------------------- Pallas kernel ------------------------------- #

def _gradcam_fused_kernel(p_ref, wmat_ref, bconv_ref, wfc_ref, bfc_ref,
                          rbig_ref, cam_ref, accu_ref):
    # p:    (1, Cin*9, S)   im2col patches for this batch item
    # wmat: (Cf, Cin*9)     conv weight        bconv: (Cf, 1)
    # wfc:  (K, Cf)         FC weight          bfc:   (K, 1)
    # rbig: (S, H*W)        separable bilinear matrices, pre-Kroneckered
    # cam:  (1, 1, H*W)     accu: (1, 1, K)
    patches = p_ref[0]                                               # (Cin*9, S)
    k = wfc_ref.shape[0]
    s = patches.shape[1]
    inv_s = 1.0 / s                                                  # static const

    # --- target layer: 3x3 / stride-2 conv as GEMM; S on the lane axis ------
    feat = (jnp.dot(wmat_ref[...], patches, preferred_element_type=jnp.float32)
            + bconv_ref[...])                                        # (Cf, S)

    # --- classifier head: logits = FC(GAP(relu(feature))) -------------------
    relu_feat = jnp.maximum(feat, 0.0)
    pooled = jnp.sum(relu_feat, axis=1, keepdims=True) * inv_s       # (Cf, 1)
    logits = (jnp.dot(wfc_ref[...], pooled, preferred_element_type=jnp.float32)
              + bfc_ref[...])                                        # (K, 1)

    # --- target = argmax over classes (first index on ties) -----------------
    max_val = jnp.max(logits, axis=0, keepdims=True)                 # (1, 1)
    iota_k = lax.broadcasted_iota(jnp.int32, (k, 1), 0)              # (K, 1)
    idx = jnp.min(jnp.where(logits == max_val, iota_k, k),
                  axis=0, keepdims=True)                             # (1, 1)
    onehot = (iota_k == idx).astype(jnp.float32)                     # (K, 1)

    # --- analytic grad of selected logit wrt feature, GAP weights, cam ------
    #   d logit_t / d feat[c, s] = W_fc[t, c] / S * 1[feat > 0]
    #   weight_c = mean_s(grad)  ;  cam = relu(sum_c feat * weight)
    mask_mean = jnp.sum((feat > 0.0).astype(jnp.float32),
                        axis=1, keepdims=True) * inv_s               # (Cf, 1)
    g = feat * (mask_mean * inv_s)                                   # (Cf, S)
    cam_all = jnp.dot(wfc_ref[...], g,
                      preferred_element_type=jnp.float32)            # (K, S)
    cam = jnp.maximum(jnp.sum(onehot * cam_all, axis=0, keepdims=True),
                      0.0)                                           # (1, S)

    # --- bilinear upsample (align_corners=True) while cam is in VMEM --------
    cam_ref[0] = jnp.dot(cam, rbig_ref[...],
                         preferred_element_type=jnp.float32)         # (1, H*W)

    # --- accu = softmax(logits), stored lane-dense as a (1, K) row ----------
    exps = jnp.exp(logits - max_val)                                 # (K, 1)
    denom = jnp.sum(exps, axis=0, keepdims=True)                     # (1, 1)
    probs = exps * pl.reciprocal(denom, approx=True)                 # (K, 1)
    eye = (lax.broadcasted_iota(jnp.int32, (k, k), 0)
           == lax.broadcasted_iota(jnp.int32, (k, k), 1)).astype(jnp.float32)
    accu_ref[0] = jnp.sum(probs * eye, axis=0, keepdims=True)        # (1, K)


# -------------------------------- glue ------------------------------------- #

def _im2col_3x3_s2(x):
    """(B, Cin, H, W) -> (B, Cin*9, Hf*Wf), channel-major, spatial on lanes."""
    B, Cin, H, W = x.shape
    Hf, Wf = H // 2, W // 2
    xp = jnp.pad(x, ((0, 0), (0, 0), (1, 1), (1, 1)))
    cols = []
    for ky in range(3):
        for kx in range(3):
            cols.append(xp[:, :, ky:ky + 2 * Hf - 1:2, kx:kx + 2 * Wf - 1:2])
    p = jnp.stack(cols, axis=2)                   # (B, Cin, 9, Hf, Wf); 9=(ky,kx)
    return p.reshape(B, Cin * 9, Hf * Wf), Hf, Wf


def _interp_matrix(out_size, in_size):
    # bilinear, align_corners=True (matches F.interpolate(..., align_corners=True))
    if in_size == 1:
        return jnp.ones((out_size, 1), jnp.float32)
    if out_size == 1:
        src = jnp.zeros((1,), jnp.float32)
    else:
        src = jnp.arange(out_size, dtype=jnp.float32) * (in_size - 1) / (out_size - 1)
    lo = jnp.clip(jnp.floor(src).astype(jnp.int32), 0, in_size - 1)
    hi = jnp.clip(lo + 1, 0, in_size - 1)
    w = src - lo.astype(jnp.float32)
    cols = jnp.arange(in_size)[None, :]
    R = ((cols == lo[:, None]).astype(jnp.float32) * (1.0 - w)[:, None]
         + (cols == hi[:, None]).astype(jnp.float32) * w[:, None])
    return R


@jax.jit
def grad_cam_forward(x, w_conv, b_conv, w_fc, b_fc):
    """Returns (grad_cam (B,1,H,W), accu (B,K)) like GradCAM.forward."""
    B, Cin, H, W = x.shape
    Cf = w_conv.shape[0]
    K = w_fc.shape[0]

    # im2col prep (host/XLA), already in the (B, Cin*9, S) layout the kernel wants
    patches, Hf, Wf = _im2col_3x3_s2(x)
    S = Hf * Wf
    HW = H * W
    Kd = Cin * 9

    w_mat = w_conv.reshape(Cf, Kd)                                   # (Cf, Cin*9)
    b_col = b_conv.reshape(Cf, 1)
    bfc_col = b_fc.reshape(K, 1)

    # separable bilinear-resize matrices folded into one (S, H*W) GEMM operand;
    # depends only on static shapes -> constant-folded under jit.
    Ry = _interp_matrix(H, Hf)                                       # (H, Hf)
    Rx = _interp_matrix(W, Wf)                                       # (W, Wf)
    r_big = jnp.einsum("yh,xw->hwyx", Ry, Rx).reshape(S, HW)         # (S, H*W)

    cam_flat, accu_row = pl.pallas_call(
        _gradcam_fused_kernel,
        out_shape=(jax.ShapeDtypeStruct((B, 1, HW), jnp.float32),
                   jax.ShapeDtypeStruct((B, 1, K), jnp.float32)),
        grid=(B,),
        in_specs=[pl.BlockSpec((1, Kd, S), lambda b: (b, 0, 0)),
                  pl.BlockSpec((Cf, Kd), lambda b: (0, 0)),
                  pl.BlockSpec((Cf, 1), lambda b: (0, 0)),
                  pl.BlockSpec((K, Cf), lambda b: (0, 0)),
                  pl.BlockSpec((K, 1), lambda b: (0, 0)),
                  pl.BlockSpec((S, HW), lambda b: (0, 0))],
        out_specs=(pl.BlockSpec((1, 1, HW), lambda b: (b, 0, 0)),
                   pl.BlockSpec((1, 1, K), lambda b: (b, 0, 0))),
        compiler_params=pltpu.CompilerParams(dimension_semantics=("parallel",)),
    )(patches, w_mat, b_col, w_fc, bfc_col, r_big)

    grad_cam = cam_flat.reshape(B, 1, H, W)
    accu = accu_row.reshape(B, K)
    return grad_cam, accu


# ------------------------------ reference ---------------------------------- #

def _reference(x, w_conv, b_conv, w_fc, b_fc):
    B, Cin, H, W = x.shape
    feat = lax.conv_general_dilated(
        x, w_conv, window_strides=(2, 2), padding=((1, 1), (1, 1)),
        dimension_numbers=("NCHW", "OIHW", "NCHW")) + b_conv[None, :, None, None]
    Hf, Wf = feat.shape[2], feat.shape[3]
    pooled = jnp.maximum(feat, 0.0).mean(axis=(2, 3))                # (B, Cf)
    logits = pooled @ w_fc.T + b_fc                                  # (B, K)
    tgt = jnp.argmax(logits, axis=1)
    w_sel = w_fc[tgt]                                                # (B, Cf)
    mask_mean = (feat > 0.0).astype(jnp.float32).mean(axis=(2, 3))
    weight = w_sel * mask_mean / (Hf * Wf)
    cam = jnp.maximum((feat * weight[:, :, None, None]).sum(axis=1), 0.0)
    Ry = _interp_matrix(H, Hf)
    Rx = _interp_matrix(W, Wf)
    cam_up = jnp.einsum("yh,bhw,xw->byx", Ry, cam, Rx)[:, None]      # (B,1,H,W)
    accu = jax.nn.softmax(logits, axis=1)
    return cam_up, accu


# --------------------------------- main ------------------------------------ #

if __name__ == "__main__":
    key = jax.random.PRNGKey(0)
    kx, kw, kb, kf, kfb = jax.random.split(key, 5)

    B, Cin, H, W = 2, 3, 16, 16
    Cf, K = 8, 10

    x = jax.random.normal(kx, (B, Cin, H, W), jnp.float32)
    w_conv = jax.random.normal(kw, (Cf, Cin, 3, 3), jnp.float32) * 0.2
    b_conv = jax.random.normal(kb, (Cf,), jnp.float32) * 0.1
    w_fc = jax.random.normal(kf, (K, Cf), jnp.float32) * 0.3
    b_fc = jax.random.normal(kfb, (K,), jnp.float32) * 0.1

    grad_cam, accu = grad_cam_forward(x, w_conv, b_conv, w_fc, b_fc)
    jax.block_until_ready((grad_cam, accu))

    cam_ref, accu_ref = _reference(x, w_conv, b_conv, w_fc, b_fc)
    np.testing.assert_allclose(np.asarray(grad_cam), np.asarray(cam_ref),
                               rtol=5e-3, atol=5e-3)
    np.testing.assert_allclose(np.asarray(accu), np.asarray(accu_ref),
                               rtol=5e-3, atol=5e-3)

    print("KERNEL_OK")
</pallas_src>

<mosaic_0001>
module attributes {stable_mosaic.version = 11 : i64} {
  func.func @_gradcam_fused_kernel(%arg0: i32, %arg1: memref<1x27x64xf32, #tpu.memory_space<vmem>>, %arg2: memref<8x27xf32, #tpu.memory_space<vmem>>, %arg3: memref<8x1xf32, #tpu.memory_space<vmem>>, %arg4: memref<10x8xf32, #tpu.memory_space<vmem>>, %arg5: memref<10x1xf32, #tpu.memory_space<vmem>>, %arg6: memref<64x256xf32, #tpu.memory_space<vmem>>, %arg7: memref<1x1x256xf32, #tpu.memory_space<vmem>>, %arg8: memref<1x1x10xf32, #tpu.memory_space<vmem>>) attributes {dimension_semantics = [#tpu.dimension_semantics<parallel>], iteration_bounds = array<i64: 2>, scalar_prefetch = 0 : i64, scratch_operands = 0 : i64, tpu.core_type = #tpu.core_type<tc>, window_params = [{transform_indices = @transform_0, window_bounds = array<i64: 1, 27, 64>}, {pipeline_mode = #tpu.pipeline_mode<synchronous>, transform_indices = @transform_1, window_bounds = array<i64: 8, 27>}, {pipeline_mode = #tpu.pipeline_mode<synchronous>, transform_indices = @transform_2, window_bounds = array<i64: 8, 1>}, {pipeline_mode = #tpu.pipeline_mode<synchronous>, transform_indices = @transform_3, window_bounds = array<i64: 10, 8>}, {pipeline_mode = #tpu.pipeline_mode<synchronous>, transform_indices = @transform_4, window_bounds = array<i64: 10, 1>}, {pipeline_mode = #tpu.pipeline_mode<synchronous>, transform_indices = @transform_5, window_bounds = array<i64: 64, 256>}, {transform_indices = @transform_6, window_bounds = array<i64: 1, 1, 256>}, {transform_indices = @transform_7, window_bounds = array<i64: 1, 1, 10>}]} {
    %c0 = arith.constant 0 : index
    %c0_0 = arith.constant 0 : index
    %c0_1 = arith.constant 0 : index
    %0 = vector.load %arg1[%c0, %c0_0, %c0_1] : memref<1x27x64xf32, #tpu.memory_space<vmem>>, vector<1x27x64xf32>
    %1 = vector.shape_cast %0 : vector<1x27x64xf32> to vector<27x64xf32>
    %c0_2 = arith.constant 0 : index
    %c0_3 = arith.constant 0 : index
    %2 = vector.load %arg2[%c0_2, %c0_3] : memref<8x27xf32, #tpu.memory_space<vmem>>, vector<8x27xf32>
    %cst = arith.constant dense<0.000000e+00> : vector<8x64xf32>
    %3 = tpu.matmul %2, %1, %cst {dimension_numbers = #tpu.dot_dimension_numbers<[1], [0], [0], [1], [0, 0, 1, 1], [], []>} : vector<8x27xf32>, vector<27x64xf32>, vector<8x64xf32> -> vector<8x64xf32>
    %c0_4 = arith.constant 0 : index
    %c0_5 = arith.constant 0 : index
    %4 = vector.load %arg3[%c0_4, %c0_5] : memref<8x1xf32, #tpu.memory_space<vmem>>, vector<8x1xf32>
    %5 = vector.broadcast %4 : vector<8x1xf32> to vector<8x64xf32>
    %6 = arith.addf %3, %5 : vector<8x64xf32>
    %cst_6 = arith.constant 0.000000e+00 : f32
    %7 = vector.broadcast %cst_6 : f32 to vector<8x64xf32>
    %8 = arith.maximumf %6, %7 : vector<8x64xf32>
    %cst_7 = arith.constant dense<0.000000e+00> : vector<8xf32>
    %9 = vector.multi_reduction <add>, %8, %cst_7 [1] : vector<8x64xf32> to vector<8xf32>
    %10 = vector.shape_cast %9 : vector<8xf32> to vector<8x1xf32>
    %cst_8 = arith.constant 1.562500e-02 : f32
    %11 = vector.broadcast %cst_8 : f32 to vector<8x1xf32>
    %12 = arith.mulf %10, %11 : vector<8x1xf32>
    %c0_9 = arith.constant 0 : index
    %c0_10 = arith.constant 0 : index
    %13 = vector.load %arg4[%c0_9, %c0_10] : memref<10x8xf32, #tpu.memory_space<vmem>>, vector<10x8xf32>
    %cst_11 = arith.constant dense<0.000000e+00> : vector<10x1xf32>
    %14 = tpu.matmul %13, %12, %cst_11 {dimension_numbers = #tpu.dot_dimension_numbers<[1], [0], [0], [1], [0, 0, 1, 1], [], []>} : vector<10x8xf32>, vector<8x1xf32>, vector<10x1xf32> -> vector<10x1xf32>
    %c0_12 = arith.constant 0 : index
    %c0_13 = arith.constant 0 : index
    %15 = vector.load %arg5[%c0_12, %c0_13] : memref<10x1xf32, #tpu.memory_space<vmem>>, vector<10x1xf32>
    %16 = arith.addf %14, %15 : vector<10x1xf32>
    %cst_14 = arith.constant dense<0xFF800000> : vector<1xf32>
    %17 = vector.multi_reduction <maximumf>, %16, %cst_14 [0] : vector<10x1xf32> to vector<1xf32>
    %18 = vector.shape_cast %17 : vector<1xf32> to vector<1x1xf32>
    %19 = tpu.iota {dimensions = array<i32: 0>} : vector<10x1xi32>
    %20 = vector.broadcast %18 : vector<1x1xf32> to vector<10x1xf32>
    %21 = arith.cmpf oeq, %16, %20 : vector<10x1xf32>
    %c10_i32 = arith.constant 10 : i32
    %22 = vector.broadcast %c10_i32 : i32 to vector<10x1xi32>
    %23 = arith.select %21, %19, %22 : vector<10x1xi1>, vector<10x1xi32>
    %cst_15 = arith.constant dense<2147483647> : vector<1xi32>
    %24 = vector.multi_reduction <minsi>, %23, %cst_15 [0] : vector<10x1xi32> to vector<1xi32>
    %25 = vector.shape_cast %24 : vector<1xi32> to vector<1x1xi32>
    %26 = vector.broadcast %25 : vector<1x1xi32> to vector<10x1xi32>
    %27 = arith.cmpi eq, %19, %26 : vector<10x1xi32>
    %28 = arith.extui %27 : vector<10x1xi1> to vector<10x1xi32>
    %29 = arith.sitofp %28 : vector<10x1xi32> to vector<10x1xf32>
    %cst_16 = arith.constant 0.000000e+00 : f32
    %30 = vector.broadcast %cst_16 : f32 to vector<8x64xf32>
    %31 = arith.cmpf ogt, %6, %30 : vector<8x64xf32>
    %32 = arith.extui %31 : vector<8x64xi1> to vector<8x64xi32>
    %33 = arith.sitofp %32 : vector<8x64xi32> to vector<8x64xf32>
    %cst_17 = arith.constant dense<0.000000e+00> : vector<8xf32>
    %34 = vector.multi_reduction <add>, %33, %cst_17 [1] : vector<8x64xf32> to vector<8xf32>
    %35 = vector.shape_cast %34 : vector<8xf32> to vector<8x1xf32>
    %cst_18 = arith.constant 1.562500e-02 : f32
    %36 = vector.broadcast %cst_18 : f32 to vector<8x1xf32>
    %37 = arith.mulf %35, %36 : vector<8x1xf32>
    %cst_19 = arith.constant 1.562500e-02 : f32
    %38 = vector.broadcast %cst_19 : f32 to vector<8x1xf32>
    %39 = arith.mulf %37, %38 : vector<8x1xf32>
    %40 = vector.broadcast %39 : vector<8x1xf32> to vector<8x64xf32>
    %41 = arith.mulf %6, %40 : vector<8x64xf32>
    %c0_20 = arith.constant 0 : index
    %c0_21 = arith.constant 0 : index
    %42 = vector.load %arg4[%c0_20, %c0_21] : memref<10x8xf32, #tpu.memory_space<vmem>>, vector<10x8xf32>
    %cst_22 = arith.constant dense<0.000000e+00> : vector<10x64xf32>
    %43 = tpu.matmul %42, %41, %cst_22 {dimension_numbers = #tpu.dot_dimension_numbers<[1], [0], [0], [1], [0, 0, 1, 1], [], []>} : vector<10x8xf32>, vector<8x64xf32>, vector<10x64xf32> -> vector<10x64xf32>
    %44 = vector.broadcast %29 : vector<10x1xf32> to vector<10x64xf32>
    %45 = arith.mulf %44, %43 : vector<10x64xf32>
    %cst_23 = arith.constant dense<0.000000e+00> : vector<64xf32>
    %46 = vector.multi_reduction <add>, %45, %cst_23 [0] : vector<10x64xf32> to vector<64xf32>
    %47 = vector.shape_cast %46 : vector<64xf32> to vector<1x64xf32>
    %cst_24 = arith.constant 0.000000e+00 : f32
    %48 = vector.broadcast %cst_24 : f32 to vector<1x64xf32>
    %49 = arith.maximumf %47, %48 : vector<1x64xf32>
    %c0_25 = arith.constant 0 : index
    %c0_26 = arith.constant 0 : index
    %50 = vector.load %arg6[%c0_25, %c0_26] : memref<64x256xf32, #tpu.memory_space<vmem>>, vector<64x256xf32>
    %cst_27 = arith.constant dense<0.000000e+00> : vector<1x256xf32>
    %51 = tpu.matmul %49, %50, %cst_27 {dimension_numbers = #tpu.dot_dimension_numbers<[1], [0], [0], [1], [0, 0, 1, 1], [], []>} : vector<1x64xf32>, vector<64x256xf32>, vector<1x256xf32> -> vector<1x256xf32>
    %c0_28 = arith.constant 0 : index
    %c0_29 = arith.constant 0 : index
    %c0_30 = arith.constant 0 : index
    %52 = vector.load %arg7[%c0_28, %c0_29, %c0_30] : memref<1x1x256xf32, #tpu.memory_space<vmem>>, vector<1x1x256xf32>
    %53 = vector.shape_cast %52 : vector<1x1x256xf32> to vector<1x256xf32>
    %54 = vector.shape_cast %51 : vector<1x256xf32> to vector<1x1x256xf32>
    tpu.vector_store %arg7[%c0_28, %c0_29, %c0_30], %54 {strides = array<i32>} : memref<1x1x256xf32, #tpu.memory_space<vmem>>, vector<1x1x256xf32>,
    %55 = vector.broadcast %18 : vector<1x1xf32> to vector<10x1xf32>
    %56 = arith.subf %16, %55 : vector<10x1xf32>
    %57 = math.exp %56 : vector<10x1xf32>
    %cst_31 = arith.constant dense<0.000000e+00> : vector<1xf32>
    %58 = vector.multi_reduction <add>, %57, %cst_31 [0] : vector<10x1xf32> to vector<1xf32>
    %59 = vector.shape_cast %58 : vector<1xf32> to vector<1x1xf32>
    %60 = tpu.reciprocal %59 {approx = true} : vector<1x1xf32> -> vector<1x1xf32>
    %61 = vector.broadcast %60 : vector<1x1xf32> to vector<10x1xf32>
    %62 = arith.mulf %57, %61 : vector<10x1xf32>
    %63 = tpu.iota {dimensions = array<i32: 0>} : vector<10x10xi32>
    %64 = tpu.iota {dimensions = array<i32: 1>} : vector<10x10xi32>
    %65 = arith.cmpi eq, %63, %64 : vector<10x10xi32>
    %66 = arith.extui %65 : vector<10x10xi1> to vector<10x10xi32>
    %67 = arith.sitofp %66 : vector<10x10xi32> to vector<10x10xf32>
    %68 = vector.broadcast %62 : vector<10x1xf32> to vector<10x10xf32>
    %69 = arith.mulf %68, %67 : vector<10x10xf32>
    %cst_32 = arith.constant dense<0.000000e+00> : vector<10xf32>
    %70 = vector.multi_reduction <add>, %69, %cst_32 [0] : vector<10x10xf32> to vector<10xf32>
    %71 = vector.shape_cast %70 : vector<10xf32> to vector<1x10xf32>
    %c0_33 = arith.constant 0 : index
    %c0_34 = arith.constant 0 : index
    %c0_35 = arith.constant 0 : index
    %72 = vector.load %arg8[%c0_33, %c0_34, %c0_35] : memref<1x1x10xf32, #tpu.memory_space<vmem>>, vector<1x1x10xf32>
    %73 = vector.shape_cast %72 : vector<1x1x10xf32> to vector<1x10xf32>
    %74 = vector.shape_cast %71 : vector<1x10xf32> to vector<1x1x10xf32>
    tpu.vector_store %arg8[%c0_33, %c0_34, %c0_35], %74 {strides = array<i32>} : memref<1x1x10xf32, #tpu.memory_space<vmem>>, vector<1x1x10xf32>,
    return
  }
  func.func @transform_0(%arg0: i32) -> (i32, i32, i32) {
    %c0_i32 = arith.constant 0 : i32
    %c0_i32_0 = arith.constant 0 : i32
    %c0_i32_1 = arith.constant 0 : i32
    return %arg0, %c0_i32, %c0_i32_0 : i32, i32, i32
  }
  func.func @transform_1(%arg0: i32) -> (i32, i32) {
    %c0_i32 = arith.constant 0 : i32
    %c0_i32_0 = arith.constant 0 : i32
    %c0_i32_1 = arith.constant 0 : i32
    return %c0_i32, %c0_i32_0 : i32, i32
  }
  func.func @transform_2(%arg0: i32) -> (i32, i32) {
    %c0_i32 = arith.constant 0 : i32
    %c0_i32_0 = arith.constant 0 : i32
    %c0_i32_1 = arith.constant 0 : i32
    return %c0_i32, %c0_i32_0 : i32, i32
  }
  func.func @transform_3(%arg0: i32) -> (i32, i32) {
    %c0_i32 = arith.constant 0 : i32
    %c0_i32_0 = arith.constant 0 : i32
    %c0_i32_1 = arith.constant 0 : i32
    return %c0_i32, %c0_i32_0 : i32, i32
  }
  func.func @transform_4(%arg0: i32) -> (i32, i32) {
    %c0_i32 = arith.constant 0 : i32
    %c0_i32_0 = arith.constant 0 : i32
    %c0_i32_1 = arith.constant 0 : i32
    return %c0_i32, %c0_i32_0 : i32, i32
  }
  func.func @transform_5(%arg0: i32) -> (i32, i32) {
    %c0_i32 = arith.constant 0 : i32
    %c0_i32_0 = arith.constant 0 : i32
    %c0_i32_1 = arith.constant 0 : i32
    return %c0_i32, %c0_i32_0 : i32, i32
  }
  func.func @transform_6(%arg0: i32) -> (i32, i32, i32) {
    %c0_i32 = arith.constant 0 : i32
    %c0_i32_0 = arith.constant 0 : i32
    %c0_i32_1 = arith.constant 0 : i32
    return %arg0, %c0_i32, %c0_i32_0 : i32, i32, i32
  }
  func.func @transform_7(%arg0: i32) -> (i32, i32, i32) {
    %c0_i32 = arith.constant 0 : i32
    %c0_i32_0 = arith.constant 0 : i32
    %c0_i32_1 = arith.constant 0 : i32
    return %arg0, %c0_i32, %c0_i32_0 : i32, i32, i32
  }
}

</mosaic_0001>

<llo_original>
// kernel: grad_cam_forward.1
$region0: #{grad_cam_forward.1}
  #allocation0 [shape = 'u32[]', space=smem, size = 0x4, offset = 0x4, fixed_abs, tag = 'smem constant byte address 0x4 - core index']
  #allocation1 [shape = 'u32[144,128]{1,0:T(1,128)}', space=vmem, size = 0x12000, scoped, tag = 'internal scratch']
  %s0 = inlined_call_operand.vmem [shape: f32[2,27,64], index: 0, kind: input, shape index: {}]
  %s1 = inlined_call_operand.vmem [shape: f32[8,27], index: 1, kind: input, shape index: {}]
  %s2 = inlined_call_operand.vmem [shape: f32[8,1], index: 2, kind: input, shape index: {}]
  %s3 = inlined_call_operand.vmem [shape: f32[10,8], index: 3, kind: input, shape index: {}]
  %s4 = inlined_call_operand.vmem [shape: f32[10,1], index: 4, kind: input, shape index: {}]
  %s5 = inlined_call_operand.vmem [shape: f32[64,256], index: 5, kind: input, shape index: {}]
  %s6 = inlined_call_operand.vmem [shape: f32[2,1,256], index: 6, kind: output, shape index: {0}]
  %s7 = inlined_call_operand.hbm [shape: f32[2,1,10], index: 7, kind: output, shape index: {1}]
  %8 = xla_tuple %s6, %s7
  %s9 = sld [smem:[#allocation0]]
  $region65: #{grad_cam_forward.1} parent=0
    _
  %s11 = ssub.s32 1, %s9
  %s12 = scalar_select 0, %s11, %s9
  $region1: #{grad_cam_forward.1} parent=0
    #allocation2 [shape = 'u8[1024]{0}', space=vmem, size = 0x400, scoped, tag = 'output window, operand 1']
    #allocation3 [shape = 's32[2]{0}', space=sflag, size = 0x8, scoped, tag = 'scoped memory for grad_cam_forward.1']
    %13 = vsyncpa [#allocation3], 0
    %s14 = scalar_lea.sflag [#allocation3], 1
    %15 = vsyncpa %s14, 0
    loop: start=0, step=1, limit=4
    $region2: #{grad_cam_forward.1} parent=1 // loop_pre_header
      _
    $region3: #{grad_cam_forward.1} parent=1 // loop_header
      %s17 = sphi 0, %s21
      %p18 = scmp.ge.s32.totalorder %s17, 4
      %s27 = sphi 0, %s29
      %s30 = sphi 0, %s27
      %s31 = sphi 0, %s30
      %s47 = sphi 0, %s31
      %s51 = sphi 0, %s51
      %s53 = sphi 0, %s51
      %s54 = sphi 0, %s53
      %s68 = sphi 0, %s54
      %s72 = sphi 0, %s72
      %s74 = sphi 0, %s72
      %s75 = sphi 0, %s74
      %s89 = sphi 0, %s75
      %s93 = sphi 0, %s93
      %s95 = sphi 0, %s93
      %s96 = sphi 0, %s95
      %s110 = sphi 0, %s96
      %s114 = sphi 0, %s114
      %s116 = sphi 0, %s114
      %s117 = sphi 0, %s116
      %s131 = sphi 0, %s117
      %s135 = sphi 0, %s135
      %s137 = sphi 0, %s135
      %s138 = sphi 0, %s137
      %s152 = sphi 0, %s138
      %s158 = sphi 0, %s160
      %s161 = sphi 0, %s158
      %s162 = sphi 0, %s161
      %s178 = sphi 0, %s162
      %s184 = sphi 0, %s186
      %s187 = sphi 0, %s184
      %s188 = sphi 0, %s187
      %s204 = sphi 0, %s188
    $region4: #{grad_cam_forward.1} parent=1 // loop_header_branch
      %20 = sbr.rel (%p18) target = $region8
    $region5: #{grad_cam_forward.1} parent=1 // loop_body
      %s22 = ssub.s32 %s17, 1
      %s23 = ssub.s32 %s17, 2
      %s24 = sadd.s32 %s17, 1
      %s25 = ssub.s32 %s17, %s24
      %p26 = scmp.eq.s32.totalorder %s25, 0
      %s28 = sadd.s32 %s27, 1
      %s29 = scalar_select %p26, %s27, %s28
      %p32 = pneg %p26
      %p33 = scmp.eq.s32.totalorder %s17, 1
      %p34 = por %p32, %p33
      %p35 = scmp.ne.s32.totalorder %s27, %s30
      %p36 = scmp.eq.s32.totalorder %s17, 0
      %p37 = por %p35, %p36
      %p38 = scmp.ne.s32.totalorder %s27, %s30
      %p39 = scmp.eq.s32.totalorder %s22, 1
      %p40 = por %p38, %p39
      %p41 = scmp.ne.s32.totalorder %s30, %s31
      %p42 = scmp.eq.s32.totalorder %s22, 0
      %p43 = por %p41, %p42
      %p44 = scmp.ne.s32.totalorder %s30, %s31
      %p45 = scmp.eq.s32.totalorder %s23, 1
      %p46 = por %p44, %p45
      %p48 = scmp.ne.s32.totalorder %s31, %s47
      %p49 = scmp.eq.s32.totalorder %s23, 0
      %p50 = por %p48, %p49
      %s52 = sadd.s32 %s51, 1
      %p55 = scmp.eq.s32.totalorder %s17, 1
      %p56 = scmp.ne.s32.totalorder %s51, %s53
      %p57 = scmp.eq.s32.totalorder %s17, 0
      %p58 = por %p56, %p57
      %p59 = scmp.ne.s32.totalorder %s51, %s53
      %p60 = scmp.eq.s32.totalorder %s22, 1
      %p61 = por %p59, %p60
      %p62 = scmp.ne.s32.totalorder %s53, %s54
      %p63 = scmp.eq.s32.totalorder %s22, 0
      %p64 = por %p62, %p63
      %p65 = scmp.ne.s32.totalorder %s53, %s54
      %p66 = scmp.eq.s32.totalorder %s23, 1
      %p67 = por %p65, %p66
      %p69 = scmp.ne.s32.totalorder %s54, %s68
      %p70 = scmp.eq.s32.totalorder %s23, 0
      %p71 = por %p69, %p70
      %s73 = sadd.s32 %s72, 1
      %p76 = scmp.eq.s32.totalorder %s17, 1
      %p77 = scmp.ne.s32.totalorder %s72, %s74
      %p78 = scmp.eq.s32.totalorder %s17, 0
      %p79 = por %p77, %p78
      %p80 = scmp.ne.s32.totalorder %s72, %s74
      %p81 = scmp.eq.s32.totalorder %s22, 1
      %p82 = por %p80, %p81
      %p83 = scmp.ne.s32.totalorder %s74, %s75
      %p84 = scmp.eq.s32.totalorder %s22, 0
      %p85 = por %p83, %p84
      %p86 = scmp.ne.s32.totalorder %s74, %s75
      %p87 = scmp.eq.s32.totalorder %s23, 1
      %p88 = por %p86, %p87
      %p90 = scmp.ne.s32.totalorder %s75, %s89
      %p91 = scmp.eq.s32.totalorder %s23, 0
      %p92 = por %p90, %p91
      %s94 = sadd.s32 %s93, 1
      %p97 = scmp.eq.s32.totalorder %s17, 1
      %p98 = scmp.ne.s32.totalorder %s93, %s95
      %p99 = scmp.eq.s32.totalorder %s17, 0
      %p100 = por %p98, %p99
      %p101 = scmp.ne.s32.totalorder %s93, %s95
      %p102 = scmp.eq.s32.totalorder %s22, 1
      %p103 = por %p101, %p102
      %p104 = scmp.ne.s32.totalorder %s95, %s96
      %p105 = scmp.eq.s32.totalorder %s22, 0
      %p106 = por %p104, %p105
      %p107 = scmp.ne.s32.totalorder %s95, %s96
      %p108 = scmp.eq.s32.totalorder %s23, 1
      %p109 = por %p107, %p108
      %p111 = scmp.ne.s32.totalorder %s96, %s110
      %p112 = scmp.eq.s32.totalorder %s23, 0
      %p113 = por %p111, %p112
      %s115 = sadd.s32 %s114, 1
      %p118 = scmp.eq.s32.totalorder %s17, 1
      %p119 = scmp.ne.s32.totalorder %s114, %s116
      %p120 = scmp.eq.s32.totalorder %s17, 0
      %p121 = por %p119, %p120
      %p122 = scmp.ne.s32.totalorder %s114, %s116
      %p123 = scmp.eq.s32.totalorder %s22, 1
      %p124 = por %p122, %p123
      %p125 = scmp.ne.s32.totalorder %s116, %s117
      %p126 = scmp.eq.s32.totalorder %s22, 0
      %p127 = por %p125, %p126
      %p128 = scmp.ne.s32.totalorder %s116, %s117
      %p129 = scmp.eq.s32.totalorder %s23, 1
      %p130 = por %p128, %p129
      %p132 = scmp.ne.s32.totalorder %s117, %s131
      %p133 = scmp.eq.s32.totalorder %s23, 0
      %p134 = por %p132, %p133
      %s136 = sadd.s32 %s135, 1
      %p139 = scmp.eq.s32.totalorder %s17, 1
      %p140 = scmp.ne.s32.totalorder %s135, %s137
      %p141 = scmp.eq.s32.totalorder %s17, 0
      %p142 = por %p140, %p141
      %p143 = scmp.ne.s32.totalorder %s135, %s137
      %p144 = scmp.eq.s32.totalorder %s22, 1
      %p145 = por %p143, %p144
      %p146 = scmp.ne.s32.totalorder %s137, %s138
      %p147 = scmp.eq.s32.totalorder %s22, 0
      %p148 = por %p146, %p147
      %p149 = scmp.ne.s32.totalorder %s137, %s138
      %p150 = scmp.eq.s32.totalorder %s23, 1
      %p151 = por %p149, %p150
      %p153 = scmp.ne.s32.totalorder %s138, %s152
      %p154 = scmp.eq.s32.totalorder %s23, 0
      %p155 = por %p153, %p154
      %s156 = ssub.s32 %s17, %s24
      %p157 = scmp.eq.s32.totalorder %s156, 0
      %s159 = sadd.s32 %s158, 1
      %s160 = scalar_select %p157, %s158, %s159
      %p163 = pneg %p157
      %p164 = scmp.eq.s32.totalorder %s17, 1
      %p165 = por %p163, %p164
      %p166 = scmp.ne.s32.totalorder %s158, %s161
      %p167 = scmp.eq.s32.totalorder %s17, 0
      %p168 = por %p166, %p167
      %p169 = scmp.ne.s32.totalorder %s158, %s161
      %p170 = scmp.eq.s32.totalorder %s22, 1
      %p171 = por %p169, %p170
      %p172 = scmp.ne.s32.totalorder %s161, %s162
      %p173 = scmp.eq.s32.totalorder %s22, 0
      %p174 = por %p172, %p173
      %p175 = scmp.ne.s32.totalorder %s161, %s162
      %p176 = scmp.eq.s32.totalorder %s23, 1
      %p177 = por %p175, %p176
      %p179 = scmp.ne.s32.totalorder %s162, %s178
      %p180 = scmp.eq.s32.totalorder %s23, 0
      %p181 = por %p179, %p180
      %s182 = ssub.s32 %s17, %s24
      %p183 = scmp.eq.s32.totalorder %s182, 0
      %s185 = sadd.s32 %s184, 1
      %s186 = scalar_select %p183, %s184, %s185
      %p189 = pneg %p183
      %p190 = scmp.eq.s32.totalorder %s17, 1
      %p191 = por %p189, %p190
      %p192 = scmp.ne.s32.totalorder %s184, %s187
      %p193 = scmp.eq.s32.totalorder %s17, 0
      %p194 = por %p192, %p193
      %p195 = scmp.ne.s32.totalorder %s184, %s187
      %p196 = scmp.eq.s32.totalorder %s22, 1
      %p197 = por %p195, %p196
      %p198 = scmp.ne.s32.totalorder %s187, %s188
      %p199 = scmp.eq.s32.totalorder %s22, 0
      %p200 = por %p198, %p199
      %p201 = scmp.ne.s32.totalorder %s187, %s188
      %p202 = scmp.eq.s32.totalorder %s23, 1
      %p203 = por %p201, %p202
      %p205 = scmp.ne.s32.totalorder %s188, %s204
      %p206 = scmp.eq.s32.totalorder %s23, 0
      %p207 = por %p205, %p206
      %p208 = scmp.le.s32.totalorder 1, %s17
      %p209 = scmp.lt.s32.totalorder %s17, 3
      %p210 = pnand %p208, %p209
      %p211 = pneg %p210
      // Predicated region
      $region9: #{grad_cam_forward.1} parent=5 // pred_check
        _
      $region10: #{grad_cam_forward.1} parent=5 // pred_check_branch
        %213 = sbr.rel (%p210) target = $region12
      $region11: #{grad_cam_forward.1} parent=5 // pred_region
        %s214 = ssub.s32 %s17, 1
        // Predicated region
        $region13: #{grad_cam_forward.1} parent=11 // pred_check
          %p215 = pneg %p64
        $region14: #{grad_cam_forward.1} parent=11 // pred_check_branch
          %217 = sbr.rel (%p215) target = $region16
        $region15: #{grad_cam_forward.1} parent=11 // pred_region
          _
        $region16: #{grad_cam_forward.1} parent=11 // pred_fallthru
          _
        // Predicated region
        $region17: #{grad_cam_forward.1} parent=11 // pred_check
          %p218 = pneg %p85
        $region18: #{grad_cam_forward.1} parent=11 // pred_check_branch
          %220 = sbr.rel (%p218) target = $region20
        $region19: #{grad_cam_forward.1} parent=11 // pred_region
          _
        $region20: #{grad_cam_forward.1} parent=11 // pred_fallthru
          _
        // Predicated region
        $region21: #{grad_cam_forward.1} parent=11 // pred_check
          %p221 = pneg %p106
        $region22: #{grad_cam_forward.1} parent=11 // pred_check_branch
          %223 = sbr.rel (%p221) target = $region24
        $region23: #{grad_cam_forward.1} parent=11 // pred_region
          _
        $region24: #{grad_cam_forward.1} parent=11 // pred_fallthru
          _
        // Predicated region
        $region25: #{grad_cam_forward.1} parent=11 // pred_check
          %p224 = pneg %p127
        $region26: #{grad_cam_forward.1} parent=11 // pred_check_branch
          %226 = sbr.rel (%p224) target = $region28
        $region27: #{grad_cam_forward.1} parent=11 // pred_region
          _
        $region28: #{grad_cam_forward.1} parent=11 // pred_fallthru
          _
        // Predicated region
        $region29: #{grad_cam_forward.1} parent=11 // pred_check
          %p227 = pneg %p148
        $region30: #{grad_cam_forward.1} parent=11 // pred_check_branch
          %229 = sbr.rel (%p227) target = $region32
        $region31: #{grad_cam_forward.1} parent=11 // pred_region
          _
        $region32: #{grad_cam_forward.1} parent=11 // pred_fallthru
          _
      $region12: #{grad_cam_forward.1} parent=5 // pred_fallthru
        _
      %p230 = scmp.lt.s32.totalorder %s17, 2
      // Predicated region
      $region33: #{grad_cam_forward.1} parent=5 // pred_check
        %p231 = pneg %p230
      $region34: #{grad_cam_forward.1} parent=5 // pred_check_branch
        %233 = sbr.rel (%p231) target = $region36
      $region35: #{grad_cam_forward.1} parent=5 // pred_region
        // Predicated region
        $region37: #{grad_cam_forward.1} parent=35 // pred_check
          %p234 = pneg %p37
        $region38: #{grad_cam_forward.1} parent=35 // pred_check_branch
          %236 = sbr.rel (%p234) target = $region40
        $region39: #{grad_cam_forward.1} parent=35 // pred_region
          %p237 = scmp.lt.s32.totalorder %s17, 1
          %s238 = scalar_select %p237, %s17, 1
          %s239 = smul.addr %s238, 4
          %s240 = smul.addr %s239, 8
          %s241 = scalar_lea.vmem %s0, %s240
        $region40: #{grad_cam_forward.1} parent=35 // pred_fallthru
          _
      $region36: #{grad_cam_forward.1} parent=5 // pred_fallthru
        _
      %p242 = scmp.le.s32.totalorder 1, %s17
      %p243 = scmp.lt.s32.totalorder %s17, 3
      %p244 = pnand %p242, %p243
      %p245 = pneg %p244
      // Predicated region
      $region41: #{grad_cam_forward.1} parent=5 // pred_check
        _
      $region42: #{grad_cam_forward.1} parent=5 // pred_check_branch
        %247 = sbr.rel (%p244) target = $region44
      $region43: #{grad_cam_forward.1} parent=5 // pred_region
        %s248 = ssub.s32 %s17, 1
        %p249 = scmp.lt.s32.totalorder %s22, 1
        %s250 = scalar_select %p249, %s22, 1
        %s251 = smul.addr %s250, 4
        %s252 = smul.addr %s251, 8
        %s253 = scalar_lea.vmem %s0, %s252
        %p254 = pneg %p43
        %p255 = pneg %p40
        %p256 = pneg %p64
        %p257 = pneg %p61
        %p258 = pneg %p85
        %p259 = pneg %p82
        %p260 = pneg %p106
        %p261 = pneg %p103
        %p262 = pneg %p127
        %p263 = pneg %p124
        %p264 = pneg %p148
        %p265 = pneg %p145
        %p266 = pneg %p174
        %p267 = pneg %p171
        %p268 = scmp.lt.s32.totalorder %s22, 1
        %s269 = scalar_select %p268, %s22, 1
        %s270 = smul.addr %s269, 2
        %s271 = scalar_lea.vmem %s6, %s270
        %p272 = pneg %p200
        %p273 = pneg %p197
        %s274 = sand.u32 %s187, 1
        %s275 = scalar_lea.sflag [#allocation3], %s274
        %s276 = sand.u32 %s187, 1
        %s277 = scalar_lea.vmem [#allocation2], %s276
        %p278 = scmp.lt.s32.totalorder %s22, 1
        %s279 = scalar_select %p278, %s22, 1
        %s280 = smul.addr %s279, 4
        %s281 = smul.addr %s280, 8
        %s282 = scalar_lea.vmem %s0, %s281
        %p283 = scmp.lt.s32.totalorder %s22, 1
        %s284 = scalar_select %p283, %s22, 1
        %s285 = smul.addr %s284, 2
        %s286 = scalar_lea.vmem %s6, %s285
        %v287 = vld [vmem:[%s282] sm:$0xff]
        %v288 = vld [vmem:[%s282 + $0x8] sm:$0xff]
        %v289 = vld [vmem:[%s282 + $0x10] sm:$0xff]
        %v290 = vld [vmem:[%s282 + $0x18] sm:$0x7]
        %v291 = vld [vmem:[%s1] sm:$0xff]
        %v292 = vld [vmem:[%s2] sm:$0xff]
        %294 = vset.pattern.permute.xlu0 0
        %295 = vperm.xlu0 %294, %v292
        %v296 = vpop.permute.xlu0 %295
        %vm298 = vcmask 220160
        %v300 = vsel %vm298, %v291, 0
        %vm302 = vcmask 1042432
        %v304 = vsel %vm302, %v290, 0
        %306 = vmatprep.subr.mxu0 0.0
        %307 = vmatpush1.msra.mxu0 %v287
        %308 = vmatprep.subr.mxu0 0.0
        %309 = vmatpush1.msra.mxu0 %v288
        %310 = vmatprep.subr.mxu0 0.0
        %311 = vmatpush1.msra.mxu0 %v289
        %312 = vmatprep.subr.mxu0 0.0
        %313 = vmatpush1.msra.mxu0 %v304
        %314 = vmatprep.subr.mxu0 0.0
        %315 = vmatpush1.msra.mxu0 0.0
        %316 = vmatprep.subr.mxu0 0.0
        %317 = vmatpush1.msra.mxu0 0.0
        %318 = vmatprep.subr.mxu0 0.0
        %319 = vmatpush1.msra.mxu0 0.0
        %320 = vmatprep.subr.mxu0 0.0
        %321 = vmatpush1.msra.mxu0 0.0
        %322 = vmatprep.subr.mxu0 0.0
        %323 = vmatpush1.msra.mxu0 0.0
        %324 = vmatprep.subr.mxu0 0.0
        %325 = vmatpush1.msra.mxu0 0.0
        %326 = vmatprep.subr.mxu0 0.0
        %327 = vmatpush1.msra.mxu0 0.0
        %328 = vmatprep.subr.mxu0 0.0
        %329 = vmatpush1.msra.mxu0 0.0
        %330 = vmatprep.subr.mxu0 0.0
        %331 = vmatpush1.msra.mxu0 0.0
        %332 = vmatprep.subr.mxu0 0.0
        %333 = vmatpush1.msra.mxu0 0.0
        %334 = vmatprep.subr.mxu0 0.0
        %335 = vmatpush1.msra.mxu0 0.0
        %336 = vmatprep.subr.mxu0 0.0
        %337 = vmatpush1.msra.mxu0 0.0
        %338 = vmatprep.subr.mxu0 0.0
        %339 = vmatpush1.msra.mxu0 0.0
        %340 = vmatprep.subr.mxu0 0.0
        %341 = vmatpush1.msra.mxu0 0.0
        %342 = vmatprep.subr.mxu0 0.0
        %343 = vmatpush1.msra.mxu0 0.0
        %344 = vmatprep.subr.mxu0 0.0
        %345 = vmatpush1.msra.mxu0 0.0
        %346 = vmatprep.subr.mxu0 0.0
        %347 = vmatpush1.msra.mxu0 0.0
        %348 = vmatprep.subr.mxu0 0.0
        %349 = vmatpush1.msra.mxu0 0.0
        %350 = vmatprep.subr.mxu0 0.0
        %351 = vmatpush1.msra.mxu0 0.0
        %352 = vmatprep.subr.mxu0 0.0
        %353 = vmatpush1.msra.mxu0 0.0
        %354 = vmatprep.subr.mxu0 0.0
        %355 = vmatpush1.msra.mxu0 0.0
        %356 = vmatprep.subr.mxu0 0.0
        %357 = vmatpush1.msra.mxu0 0.0
        %358 = vmatprep.subr.mxu0 0.0
        %359 = vmatpush1.msra.mxu0 0.0
        %360 = vmatprep.subr.mxu0 0.0
        %361 = vmatpush1.msra.mxu0 0.0
        %362 = vmatprep.subr.mxu0 0.0
        %363 = vmatpush1.msra.mxu0 0.0
        %364 = vmatprep.subr.mxu0 0.0
        %365 = vmatpush1.msra.mxu0 0.0
        %366 = vmatprep.subr.mxu0 0.0
        %367 = vmatpush1.msra.mxu0 0.0
        %368 = vmatprep.subr.mxu0 0.0
        %369 = vmatpush1.msra.mxu0 0.0
        %370 = vmatprep.mubr.f32.mxu0 0.0
        %371 = vmatmul.mubr.f32.gmra.mrb[0].mxu0 %v300
        %v372 = vpop.f32.mrb[0].mxu0
        %v373 = vadd.f32 %v296, %v372
        %v374 = vpop.f32.mrb[0].mxu0
        %375 = vdwg.mxu0
        %v376 = vmax.f32 %v373, 0.0
        %vm377 = vcmask 523264
        %v378 = vsel %vm377, %v376, 0.0
        %379 = vadd.xlane.f32.xlu0 %v378
        %v380 = vpop.xlane.xlu0 %379
        %v381 = vmul.f32 %v380, 0.015625
        %v382 = vld [vmem:[%s3] sm:$0xff]
        %v383 = vld [vmem:[%s3 + $0x8] sm:$0x3]
        %v384 = vld [vmem:[%s4] sm:$0xff]
        %v385 = vld [vmem:[%s4 + $0x8] sm:$0x3]
        %vm386 = vcmask 64512
        %v388 = vsel %vm386, %v382, 0
        %v391 = vsel %vm386, %v383, 0
        %393 = vmatprep.subr.mxu0 0.0
        %394 = vmatpush1.msra.mxu0 %v381
        %395 = vmatprep.subr.mxu0 0.0
        %396 = vmatpush1.msra.mxu0 0.0
        %397 = vmatprep.subr.mxu0 0.0
        %398 = vmatpush1.msra.mxu0 0.0
        %399 = vmatprep.subr.mxu0 0.0
        %400 = vmatpush1.msra.mxu0 0.0
        %401 = vmatprep.subr.mxu0 0.0
        %402 = vmatpush1.msra.mxu0 0.0
        %403 = vmatprep.subr.mxu0 0.0
        %404 = vmatpush1.msra.mxu0 0.0
        %405 = vmatprep.subr.mxu0 0.0
        %406 = vmatpush1.msra.mxu0 0.0
        %407 = vmatprep.subr.mxu0 0.0
        %408 = vmatpush1.msra.mxu0 0.0
        %409 = vmatprep.subr.mxu0 0.0
        %410 = vmatpush1.msra.mxu0 0.0
        %411 = vmatprep.subr.mxu0 0.0
        %412 = vmatpush1.msra.mxu0 0.0
        %413 = vmatprep.subr.mxu0 0.0
        %414 = vmatpush1.msra.mxu0 0.0
        %415 = vmatprep.subr.mxu0 0.0
        %416 = vmatpush1.msra.mxu0 0.0
        %417 = vmatprep.subr.mxu0 0.0
        %418 = vmatpush1.msra.mxu0 0.0
        %419 = vmatprep.subr.mxu0 0.0
        %420 = vmatpush1.msra.mxu0 0.0
        %421 = vmatprep.subr.mxu0 0.0
        %422 = vmatpush1.msra.mxu0 0.0
        %423 = vmatprep.subr.mxu0 0.0
        %424 = vmatpush1.msra.mxu0 0.0
        %425 = vmatprep.subr.mxu0 0.0
        %426 = vmatpush1.msra.mxu0 0.0
        %427 = vmatprep.subr.mxu0 0.0
        %428 = vmatpush1.msra.mxu0 0.0
        %429 = vmatprep.subr.mxu0 0.0
        %430 = vmatpush1.msra.mxu0 0.0
        %431 = vmatprep.subr.mxu0 0.0
        %432 = vmatpush1.msra.mxu0 0.0
        %433 = vmatprep.subr.mxu0 0.0
        %434 = vmatpush1.msra.mxu0 0.0
        %435 = vmatprep.subr.mxu0 0.0
        %436 = vmatpush1.msra.mxu0 0.0
        %437 = vmatprep.subr.mxu0 0.0
        %438 = vmatpush1.msra.mxu0 0.0
        %439 = vmatprep.subr.mxu0 0.0
        %440 = vmatpush1.msra.mxu0 0.0
        %441 = vmatprep.subr.mxu0 0.0
        %442 = vmatpush1.msra.mxu0 0.0
        %443 = vmatprep.subr.mxu0 0.0
        %444 = vmatpush1.msra.mxu0 0.0
        %445 = vmatprep.subr.mxu0 0.0
        %446 = vmatpush1.msra.mxu0 0.0
        %447 = vmatprep.subr.mxu0 0.0
        %448 = vmatpush1.msra.mxu0 0.0
        %449 = vmatprep.subr.mxu0 0.0
        %450 = vmatpush1.msra.mxu0 0.0
        %451 = vmatprep.subr.mxu0 0.0
        %452 = vmatpush1.msra.mxu0 0.0
        %453 = vmatprep.subr.mxu0 0.0
        %454 = vmatpush1.msra.mxu0 0.0
        %455 = vmatprep.subr.mxu0 0.0
        %456 = vmatpush1.msra.mxu0 0.0
        %457 = vmatprep.mubr.f32.mxu0 0.0
        %458 = vmatmul.mubr.f32.gmra.mrb[0].mxu0 %v388
        %v459 = vpop.f32.mrb[0].mxu0
        %v460 = vadd.f32 %v384, %v459
        %v461 = vpop.f32.mrb[0].mxu0
        %462 = vmatprep.mubr.f32.mxu0 0.0
        %463 = vmatmul.mubr.f32.gmra.mrb[0].mxu0 %v391
        %v464 = vpop.f32.mrb[0].mxu0
        %v465 = vadd.f32 %v385, %v464
        %v466 = vpop.f32.mrb[0].mxu0
        %467 = vdwg.mxu0
        %vm468 = vcmask 7168
        %v469 = vsel %vm468, %v460, -inf
        %vm470 = vcmask 1024
        %v471 = vsel %vm470, %v465, -inf
        %v472 = vmax.f32 %v469, %v471
        %v473 = vrot.slane %v472, 4
        %v474 = vmax.f32 %v472, %v473
        %v475 = vrot.slane %v474, 2
        %v476 = vmax.f32 %v474, %v475
        %v477 = vrot.slane %v476, 1
        %v478 = vmax.f32 %v476, %v477
        %v479 = vlaneseq
        %v480 = vshrl.u32 %v479, 7
        %v481 = vadd.s32 %v480, 8
        %vm482 = vcmp.eq.f32.partialorder %v460, %v478
        %vm483 = vcmp.eq.f32.partialorder %v465, %v478
        %v484 = vsel %vm482, %v480, 10
        %v485 = vsel %vm483, %v481, 10
        %v486 = vsel %vm468, %v484, 2147483647
        %v487 = vsel %vm470, %v485, 2147483647
        %vm488 = vcmp.lt.s32.totalorder %v486, %v487
        %v489 = vsel %vm488, %v486, %v487
        %v490 = vrot.slane %v489, 4
        %vm491 = vcmp.lt.s32.totalorder %v489, %v490
        %v492 = vsel %vm491, %v489, %v490
        %v493 = vrot.slane %v492, 2
        %vm494 = vcmp.lt.s32.totalorder %v492, %v493
        %v495 = vsel %vm494, %v492, %v493
        %v496 = vrot.slane %v495, 1
        %vm497 = vcmp.lt.s32.totalorder %v495, %v496
        %v498 = vsel %vm497, %v495, %v496
        %vm499 = vcmp.eq.s32.totalorder %v480, %v498
        %vm500 = vcmp.eq.s32.totalorder %v481, %v498
        %v501 = vsel %vm499, 1, 0
        %v502 = vsel %vm500, 1, 0
        %v503 = vcvt.s32.f32 %v501
        %v504 = vcvt.s32.f32 %v502
        %vm505 = vcmp.gt.f32.partialorder %v373, 0.0
        %v506 = vsel %vm505, 1, 0
        %v507 = vcvt.s32.f32 %v506
        %v508 = vsel %vm377, %v507, 0.0
        %509 = vadd.xlane.f32.xlu0 %v508
        %v510 = vpop.xlane.xlu0 %509
        %v511 = vmul.f32 %v510, 0.015625
        %v512 = vmul.f32 %v511, 0.015625
        %v513 = vmul.f32 %v373, %v512
        %514 = vmatprep.subr.mxu0 0.0
        %515 = vmatpush1.msra.mxu0 %v513
        %516 = vmatprep.subr.mxu0 0.0
        %517 = vmatpush1.msra.mxu0 0.0
        %518 = vmatprep.subr.mxu0 0.0
        %519 = vmatpush1.msra.mxu0 0.0
        %520 = vmatprep.subr.mxu0 0.0
        %521 = vmatpush1.msra.mxu0 0.0
        %522 = vmatprep.subr.mxu0 0.0
        %523 = vmatpush1.msra.mxu0 0.0
        %524 = vmatprep.subr.mxu0 0.0
        %525 = vmatpush1.msra.mxu0 0.0
        %526 = vmatprep.subr.mxu0 0.0
        %527 = vmatpush1.msra.mxu0 0.0
        %528 = vmatprep.subr.mxu0 0.0
        %529 = vmatpush1.msra.mxu0 0.0
        %530 = vmatprep.subr.mxu0 0.0
        %531 = vmatpush1.msra.mxu0 0.0
        %532 = vmatprep.subr.mxu0 0.0
        %533 = vmatpush1.msra.mxu0 0.0
        %534 = vmatprep.subr.mxu0 0.0
        %535 = vmatpush1.msra.mxu0 0.0
        %536 = vmatprep.subr.mxu0 0.0
        %537 = vmatpush1.msra.mxu0 0.0
        %538 = vmatprep.subr.mxu0 0.0
        %539 = vmatpush1.msra.mxu0 0.0
        %540 = vmatprep.subr.mxu0 0.0
        %541 = vmatpush1.msra.mxu0 0.0
        %542 = vmatprep.subr.mxu0 0.0
        %543 = vmatpush1.msra.mxu0 0.0
        %544 = vmatprep.subr.mxu0 0.0
        %545 = vmatpush1.msra.mxu0 0.0
        %546 = vmatprep.subr.mxu0 0.0
        %547 = vmatpush1.msra.mxu0 0.0
        %548 = vmatprep.subr.mxu0 0.0
        %549 = vmatpush1.msra.mxu0 0.0
        %550 = vmatprep.subr.mxu0 0.0
        %551 = vmatpush1.msra.mxu0 0.0
        %552 = vmatprep.subr.mxu0 0.0
        %553 = vmatpush1.msra.mxu0 0.0
        %554 = vmatprep.subr.mxu0 0.0
        %555 = vmatpush1.msra.mxu0 0.0
        %556 = vmatprep.subr.mxu0 0.0
        %557 = vmatpush1.msra.mxu0 0.0
        %558 = vmatprep.subr.mxu0 0.0
        %559 = vmatpush1.msra.mxu0 0.0
        %560 = vmatprep.subr.mxu0 0.0
        %561 = vmatpush1.msra.mxu0 0.0
        %562 = vmatprep.subr.mxu0 0.0
        %563 = vmatpush1.msra.mxu0 0.0
        %564 = vmatprep.subr.mxu0 0.0
        %565 = vmatpush1.msra.mxu0 0.0
        %566 = vmatprep.subr.mxu0 0.0
        %567 = vmatpush1.msra.mxu0 0.0
        %568 = vmatprep.subr.mxu0 0.0
        %569 = vmatpush1.msra.mxu0 0.0
        %570 = vmatprep.subr.mxu0 0.0
        %571 = vmatpush1.msra.mxu0 0.0
        %572 = vmatprep.subr.mxu0 0.0
        %573 = vmatpush1.msra.mxu0 0.0
        %574 = vmatprep.subr.mxu0 0.0
        %575 = vmatpush1.msra.mxu0 0.0
        %576 = vmatprep.subr.mxu0 0.0
        %577 = vmatpush1.msra.mxu0 0.0
        %578 = vmatprep.mubr.f32.mxu0 0.0
        %579 = vmatmul.mubr.f32.gmra.mrb[0].mxu0 %v388
        %v580 = vpop.f32.mrb[0].mxu0
        %v581 = vadd.f32 0.0, %v580
        %v582 = vpop.f32.mrb[0].mxu0
        %583 = vmatprep.mubr.f32.mxu0 0.0
        %584 = vmatmul.mubr.f32.gmra.mrb[0].mxu0 %v391
        %v585 = vpop.f32.mrb[0].mxu0
        %v586 = vadd.f32 0.0, %v585
        %v587 = vpop.f32.mrb[0].mxu0
        %588 = vdwg.mxu0
        %590 = vset.pattern.permute.xlu0 0
        %591 = vperm.xlu0 %590, %v503
        %v592 = vpop.permute.xlu0 %591
        %595 = vset.pattern.permute.xlu0 0
        %596 = vperm.xlu0 %595, %v504
        %v597 = vpop.permute.xlu0 %596
        %v599 = vmul.f32 %v592, %v581
        %v600 = vmul.f32 %v597, %v586
        %v601 = vsel %vm377, %v599, 0.0
        %vm602 = vcmask 517120
        %v603 = vsel %vm602, %v600, 0.0
        %v604 = vadd.f32 %v601, %v603
        %v605 = vrot.slane %v604, 4
        %v606 = vadd.f32 %v604, %v605
        %v607 = vrot.slane %v606, 2
        %v608 = vadd.f32 %v606, %v607
        %v609 = vrot.slane %v608, 1
        %v610 = vadd.f32 %v608, %v609
        %v611 = vmax.f32 %v610, 0.0
        %v612 = vld [vmem:[%s5] sm:$0xff]
        %v613 = vld [vmem:[%s5 + $0x8] sm:$0xff]
        %v614 = vld [vmem:[%s5 + $0x10] sm:$0xff]
        %v615 = vld [vmem:[%s5 + $0x18] sm:$0xff]
        %v616 = vld [vmem:[%s5 + $0x20] sm:$0xff]
        %v617 = vld [vmem:[%s5 + $0x28] sm:$0xff]
        %v618 = vld [vmem:[%s5 + $0x30] sm:$0xff]
        %v619 = vld [vmem:[%s5 + $0x38] sm:$0xff]
        %v620 = vld [vmem:[%s5 + $0x40] sm:$0xff]
        %v621 = vld [vmem:[%s5 + $0x48] sm:$0xff]
        %v622 = vld [vmem:[%s5 + $0x50] sm:$0xff]
        %v623 = vld [vmem:[%s5 + $0x58] sm:$0xff]
        %v624 = vld [vmem:[%s5 + $0x60] sm:$0xff]
        %v625 = vld [vmem:[%s5 + $0x68] sm:$0xff]
        %v626 = vld [vmem:[%s5 + $0x70] sm:$0xff]
        %v627 = vld [vmem:[%s5 + $0x78] sm:$0xff]
        %v629 = vsel %vm377, %v611, 0
        %631 = vmatprep.subr.mxu0 %v613
        %632 = vmatpush1.msra.mxu0 %v612
        %633 = vmatprep.subr.mxu0 %v615
        %634 = vmatpush1.msra.mxu0 %v614
        %635 = vmatprep.subr.mxu0 %v617
        %636 = vmatpush1.msra.mxu0 %v616
        %637 = vmatprep.subr.mxu0 %v619
        %638 = vmatpush1.msra.mxu0 %v618
        %639 = vmatprep.subr.mxu0 %v621
        %640 = vmatpush1.msra.mxu0 %v620
        %641 = vmatprep.subr.mxu0 %v623
        %642 = vmatpush1.msra.mxu0 %v622
        %643 = vmatprep.subr.mxu0 %v625
        %644 = vmatpush1.msra.mxu0 %v624
        %645 = vmatprep.subr.mxu0 %v627
        %646 = vmatpush1.msra.mxu0 %v626
        %647 = vmatprep.subr.mxu0 0.0
        %648 = vmatpush1.msra.mxu0 0.0
        %649 = vmatprep.subr.mxu0 0.0
        %650 = vmatpush1.msra.mxu0 0.0
        %651 = vmatprep.subr.mxu0 0.0
        %652 = vmatpush1.msra.mxu0 0.0
        %653 = vmatprep.subr.mxu0 0.0
        %654 = vmatpush1.msra.mxu0 0.0
        %655 = vmatprep.subr.mxu0 0.0
        %656 = vmatpush1.msra.mxu0 0.0
        %657 = vmatprep.subr.mxu0 0.0
        %658 = vmatpush1.msra.mxu0 0.0
        %659 = vmatprep.subr.mxu0 0.0
        %660 = vmatpush1.msra.mxu0 0.0
        %661 = vmatprep.subr.mxu0 0.0
        %662 = vmatpush1.msra.mxu0 0.0
        %663 = vmatprep.subr.mxu0 0.0
        %664 = vmatpush1.msra.mxu0 0.0
        %665 = vmatprep.subr.mxu0 0.0
        %666 = vmatpush1.msra.mxu0 0.0
        %667 = vmatprep.subr.mxu0 0.0
        %668 = vmatpush1.msra.mxu0 0.0
        %669 = vmatprep.subr.mxu0 0.0
        %670 = vmatpush1.msra.mxu0 0.0
        %671 = vmatprep.subr.mxu0 0.0
        %672 = vmatpush1.msra.mxu0 0.0
        %673 = vmatprep.subr.mxu0 0.0
        %674 = vmatpush1.msra.mxu0 0.0
        %675 = vmatprep.subr.mxu0 0.0
        %676 = vmatpush1.msra.mxu0 0.0
        %677 = vmatprep.subr.mxu0 0.0
        %678 = vmatpush1.msra.mxu0 0.0
        %679 = vmatprep.subr.mxu0 0.0
        %680 = vmatpush1.msra.mxu0 0.0
        %681 = vmatprep.subr.mxu0 0.0
        %682 = vmatpush1.msra.mxu0 0.0
        %683 = vmatprep.subr.mxu0 0.0
        %684 = vmatpush1.msra.mxu0 0.0
        %685 = vmatprep.subr.mxu0 0.0
        %686 = vmatpush1.msra.mxu0 0.0
        %687 = vmatprep.subr.mxu0 0.0
        %688 = vmatpush1.msra.mxu0 0.0
        %689 = vmatprep.subr.mxu0 0.0
        %690 = vmatpush1.msra.mxu0 0.0
        %691 = vmatprep.subr.mxu0 0.0
        %692 = vmatpush1.msra.mxu0 0.0
        %693 = vmatprep.subr.mxu0 0.0
        %694 = vmatpush1.msra.mxu0 0.0
        %695 = vmatprep.mubr.f32.mxu0 0.0
        %696 = vmatmul.mubr.f32.gmra.mrb[0].mxu0 %v629
        %v697 = vpop.f32.mrb[0].mxu0
        %v698 = vadd.f32 0.0, %v697
        %v699 = vpop.f32.mrb[0].mxu0
        %v700 = vadd.f32 0.0, %v699
        %701 = vdwg.mxu0
        %v704 = vcombine.low %v698, %v700
        %v706 = vunpack.c.l.s4 1966171168
        %v707 = vunpack.c.0.s8 %v706
        %v708 = vlaneseq
        %v709 = vshrl.u32 %v708, 7
        %v710 = vsub.s32 %v707, %v709
        %v711 = vrot.slane %v704, %v710
        %v713 = vunpack.c.l.s4 1966171168
        %v714 = vunpack.c.0.s8 %v713
        %v715 = vlaneseq
        %v716 = vshrl.u32 %v715, 7
        %v717 = vsub.s32 %v714, %v716
        %v718 = vrot.slane %v711, %v717
        %v720 = vlaneseq
        %vm721 = vcmp.ge.s32.totalorder %v720, 0
        %vm722 = vcmp.lt.s32.totalorder %v720, 256
        %vm723 = vmand %vm721, %vm722
        %724 = vst.msk [vmem:[%s286] sm:$0x3] %vm723, %v718
        %v725 = vsub.f32 %v460, %v478
        %v726 = vsub.f32 %v465, %v478
        %v727 = vmul.f32 %v725, 1.442695
        %v728 = vpow.pop %v727
        %v729 = vmul.f32 %v726, 1.442695
        %v730 = vpow.pop %v729
        %v731 = vsel %vm468, %v728, 0.0
        %v732 = vsel %vm470, %v730, 0.0
        %v733 = vadd.f32 %v731, %v732
        %v734 = vrot.slane %v733, 4
        %v735 = vadd.f32 %v733, %v734
        %v736 = vrot.slane %v735, 2
        %v737 = vadd.f32 %v735, %v736
        %v738 = vrot.slane %v737, 1
        %v739 = vadd.f32 %v737, %v738
        %v740 = vrcp.pop %v739
        %v741 = vmul.f32 %v728, %v740
        %v742 = vmul.f32 %v730, %v740
        %v743 = vlaneseq
        %v744 = vand.u32 %v743, 127
        %vm745 = vcmp.eq.s32.totalorder %v480, %v744
        %vm746 = vcmp.eq.s32.totalorder %v481, %v744
        %v747 = vsel %vm745, 1, 0
        %v748 = vsel %vm746, 1, 0
        %v749 = vcvt.s32.f32 %v747
        %v750 = vcvt.s32.f32 %v748
        %752 = vset.pattern.permute.xlu0 0
        %753 = vperm.xlu0 %752, %v741
        %v754 = vpop.permute.xlu0 %753
        %757 = vset.pattern.permute.xlu0 0
        %758 = vperm.xlu0 %757, %v742
        %v759 = vpop.permute.xlu0 %758
        %v761 = vmul.f32 %v754, %v749
        %v762 = vmul.f32 %v759, %v750
        %vm763 = vcmask 80896
        %v764 = vsel %vm763, %v761, 0.0
        %vm765 = vcmask 74752
        %v766 = vsel %vm765, %v762, 0.0
        %v767 = vadd.f32 %v764, %v766
        %v768 = vrot.slane %v767, 4
        %v769 = vadd.f32 %v767, %v768
        %v770 = vrot.slane %v769, 2
        %v771 = vadd.f32 %v769, %v770
        %v772 = vrot.slane %v771, 1
        %v773 = vadd.f32 %v771, %v772
        %vm774 = vcmask 73728
        %775 = vst.msk [vmem:[%s277] sm:$0x1] %vm774, %v773
        %p776 = scmp.lt.s32.totalorder %s22, 1
        %s777 = scalar_select %p776, %s22, 1
        %s778 = smul.addr %s777, 2
        %s779 = scalar_lea.vmem %s6, %s778
        %s780 = sand.u32 %s187, 1
        %s781 = scalar_lea.sflag [#allocation3], %s780
        %s782 = sand.u32 %s187, 1
        %s783 = scalar_lea.vmem [#allocation2], %s782
        // Predicated region
        $region45: #{grad_cam_forward.1} parent=43 // pred_check
          %p784 = pneg %p171
        $region46: #{grad_cam_forward.1} parent=43 // pred_check_branch
          %786 = sbr.rel (%p784) target = $region48
        $region47: #{grad_cam_forward.1} parent=43 // pred_region
          _
        $region48: #{grad_cam_forward.1} parent=43 // pred_fallthru
          _
        // Predicated region
        $region49: #{grad_cam_forward.1} parent=43 // pred_check
          %p787 = pneg %p197
        $region50: #{grad_cam_forward.1} parent=43 // pred_check_branch
          %789 = sbr.rel (%p787) target = $region52
        $region51: #{grad_cam_forward.1} parent=43 // pred_region
          %s791 = ssub.s32 16, 16
          %792 = vsyncadd %s781, %s791
          %s793 = smul.addr %s22, 16
          %s794 = scalar_lea.hbm %s7, %s793
          %s796 = sshll.u32 %s783, 4
          %s797 = int_to_ptr.vmem [resolvable:$true] %s796
          %799 = dma.vmem_to_hbm [thread:$0]  %s797, 16, %s794, %s781
        $region52: #{grad_cam_forward.1} parent=43 // pred_fallthru
          _
      $region44: #{grad_cam_forward.1} parent=5 // pred_fallthru
        _
      %p800 = scmp.le.s32.totalorder 2, %s17
      // Predicated region
      $region53: #{grad_cam_forward.1} parent=5 // pred_check
        %p801 = pneg %p800
      $region54: #{grad_cam_forward.1} parent=5 // pred_check_branch
        %803 = sbr.rel (%p801) target = $region56
      $region55: #{grad_cam_forward.1} parent=5 // pred_region
        %s804 = ssub.s32 %s17, 2
        // Predicated region
        $region57: #{grad_cam_forward.1} parent=55 // pred_check
          %p805 = pneg %p177
        $region58: #{grad_cam_forward.1} parent=55 // pred_check_branch
          %807 = sbr.rel (%p805) target = $region60
        $region59: #{grad_cam_forward.1} parent=55 // pred_region
          %p808 = scmp.lt.s32.totalorder %s23, 1
          %s809 = scalar_select %p808, %s23, 1
          %s810 = smul.addr %s809, 2
          %s811 = scalar_lea.vmem %s6, %s810
        $region60: #{grad_cam_forward.1} parent=55 // pred_fallthru
          _
        // Predicated region
        $region61: #{grad_cam_forward.1} parent=55 // pred_check
          %p812 = pneg %p203
        $region62: #{grad_cam_forward.1} parent=55 // pred_check_branch
          %814 = sbr.rel (%p812) target = $region64
        $region63: #{grad_cam_forward.1} parent=55 // pred_region
          %s815 = sand.u32 %s188, 1
          %s816 = scalar_lea.sflag [#allocation3], %s815
          %s817 = sand.u32 %s188, 1
          %s818 = scalar_lea.vmem [#allocation2], %s817
          %819 = dma.done %s816, 16
        $region64: #{grad_cam_forward.1} parent=55 // pred_fallthru
          _
      $region56: #{grad_cam_forward.1} parent=5 // pred_fallthru
        _
    $region6: #{grad_cam_forward.1} parent=1 // loop_footer
      %s21 = sadd.s32 1, %s17
    $region7: #{grad_cam_forward.1} parent=1 // loop_footer_branch
      %16 = sbr.rel target = $region3
    $region8: #{grad_cam_forward.1} parent=1 // loop_exit
      _
    %820 = vsyncpa [#allocation3], 1
    %s821 = scalar_lea.sflag [#allocation3], 1
    %822 = vsyncpa %s821, 1

</llo_original>
